<compile_context>
chip_gen: v7x
topology: tpu7x:2x2x1
jax: 0.10.0
libtpu: 0.0.40
codegen_flags: <defaults>
</compile_context>

<pallas_src>
import jax
import jax.numpy as jnp
import numpy as np
from jax.experimental import pallas as pl
from jax.experimental.pallas import tpu as pltpu


# ---------------------------------------------------------------------------
# Pallas kernel: fused GEMM (stride-s conv-transpose, BN scale pre-folded
# into W) + bias + ReLU, bf16 in / f32 accumulate / bf16 out.
# ---------------------------------------------------------------------------
def _deblock_kernel(x_ref, w_ref, bias_ref, o_ref):
    # x_ref: (tm, K) bf16, w_ref: (K, Nout) bf16, bias_ref: (1, Nout) f32,
    # o_ref: (tm, Nout) bf16
    y = jnp.dot(x_ref[...], w_ref[...], preferred_element_type=jnp.float32)
    o_ref[...] = jnp.maximum(y + bias_ref[...], 0.0).astype(o_ref.dtype)


def _deblock_pallas(x_bf, w_bf, bias):
    """x_bf: (M, K) bf16, w_bf: (K, Nout) bf16 (BN scale folded), bias: (1, Nout) f32."""
    M, K = x_bf.shape
    Nout = w_bf.shape[1]

    # Large M tiles amortize per-step overhead; ragged last tile handled by
    # Pallas (no explicit pad / slice round trips).
    tm = M if M <= 1024 else 1024
    grid = (pl.cdiv(M, tm),)

    cost = pl.CostEstimate(
        flops=2 * M * K * Nout,
        transcendentals=0,
        bytes_accessed=M * K * 2 + K * Nout * 2 + Nout * 4 + M * Nout * 2,
    )

    return pl.pallas_call(
        _deblock_kernel,
        out_shape=jax.ShapeDtypeStruct((M, Nout), jnp.bfloat16),
        grid_spec=pltpu.PrefetchScalarGridSpec(
            num_scalar_prefetch=0,
            grid=grid,
            in_specs=[
                pl.BlockSpec((tm, K), lambda i: (i, 0)),
                pl.BlockSpec((K, Nout), lambda i: (0, 0)),
                pl.BlockSpec((1, Nout), lambda i: (0, 0)),
            ],
            out_specs=pl.BlockSpec((tm, Nout), lambda i: (i, 0)),
        ),
        compiler_params=pltpu.CompilerParams(
            dimension_semantics=("parallel",),
            vmem_limit_bytes=32 * 1024 * 1024,
        ),
        cost_estimate=cost,
    )(x_bf, w_bf, bias)


# ---------------------------------------------------------------------------
# One deblock: ConvTranspose2d(k=s, stride=s, bias=False) -> BN(eval) -> ReLU.
# Returns NHWC bf16 (single final transpose back to NCHW happens once, at the
# very end of the FPN).
# ---------------------------------------------------------------------------
def deblock_forward_nhwc(x_nchw, w, gamma, beta, mean, var, stride, eps=1e-3):
    N, Ci, Hi, Wi = x_nchw.shape
    Co = w.shape[1]          # PyTorch ConvTranspose2d weight: (Cin, Cout, kH, kW)
    s = stride

    # Fold eval-mode BatchNorm: per-out-channel scale goes into the weight in
    # f32 (before the bf16 cast); remaining per-channel bias added in-kernel.
    inv_std = 1.0 / jnp.sqrt(var + eps)
    scale_c = gamma * inv_std                          # (Co,)
    bias_c = beta - mean * scale_c                     # (Co,)
    w_scaled = w * scale_c[None, :, None, None]        # (Ci, Co, s, s) f32
    # Weight columns ordered (kh, kw, co) so the kernel output reshapes to
    # NHWC with only one small-stride axis swap.
    w_flat = jnp.transpose(w_scaled, (0, 2, 3, 1)).reshape(Ci, s * s * Co)
    bias = jnp.tile(bias_c, s * s).reshape(1, s * s * Co)   # matches (kh,kw,co)

    # NCHW -> (N*Hi*Wi, Ci) channels-last rows; bf16 cast fuses into the copy.
    x_flat = jnp.transpose(x_nchw, (0, 2, 3, 1)).reshape(N * Hi * Wi, Ci)
    y_flat = _deblock_pallas(x_flat.astype(jnp.bfloat16),
                             w_flat.astype(jnp.bfloat16),
                             bias)                      # (M, s*s*Co) bf16

    # (M, s*s*Co) -> (N, Hi, Wi, s, s, Co) -> swap (Wi, s) -> NHWC
    y = y_flat.reshape(N, Hi, Wi, s, s, Co)
    y = jnp.transpose(y, (0, 1, 3, 2, 4, 5)).reshape(N, Hi * s, Wi * s, Co)
    return y


# ---------------------------------------------------------------------------
# Full FPN forward (mirrors SparseSECONDFPNSparse12Dense3.forward)
# ---------------------------------------------------------------------------
def sparse_second_fpn_forward(input_shape, layer_strides, feats, params,
                              upsample_strides, out_channels):
    batch_size, x_size, y_size, _ = input_shape
    scale0 = layer_strides[0] // upsample_strides[0]
    target_hw = (x_size // scale0, y_size // scale0)   # ToDenseMink spatial size

    ups = []
    for i, (x, p) in enumerate(zip(feats, params)):
        y = deblock_forward_nhwc(x, p["w"], p["gamma"], p["beta"], p["mean"],
                                 p["var"], p["stride"])
        if i <= 1:
            # ToDenseMink: dense output of shape (N, H//scale, W//scale, Cout0)
            assert y.shape == (batch_size,) + target_hw + (out_channels[0],)
        ups.append(y)

    out_nhwc = jnp.concatenate(ups, axis=-1) if len(ups) > 1 else ups[0]
    # Single NHWC -> NCHW transpose at the very end; cast back to f32 to match
    # the module's output dtype.
    return jnp.transpose(out_nhwc, (0, 3, 1, 2)).astype(jnp.float32)


# ---------------------------------------------------------------------------
# Pure-JAX f32 reference (un-folded BN) for correctness checking
# ---------------------------------------------------------------------------
def reference_deblock(x_nchw, w, gamma, beta, mean, var, stride, eps=1e-3):
    N, Ci, Hi, Wi = x_nchw.shape
    Co = w.shape[1]
    s = stride
    # out[n, co, i*s+kh, j*s+kw] = sum_ci x[n,ci,i,j] * w[ci,co,kh,kw]
    y = jnp.einsum("ncij,cokl->noikjl", x_nchw, w)
    y = y.reshape(N, Co, Hi * s, Wi * s)
    y = (y - mean[None, :, None, None]) / jnp.sqrt(var[None, :, None, None] + eps)
    y = y * gamma[None, :, None, None] + beta[None, :, None, None]
    return jnp.maximum(y, 0.0)


def reference_forward(feats, params):
    ups = [reference_deblock(x, p["w"], p["gamma"], p["beta"], p["mean"],
                             p["var"], p["stride"])
           for x, p in zip(feats, params)]
    return jnp.concatenate(ups, axis=1)


# ---------------------------------------------------------------------------
if __name__ == "__main__":
    # Small shapes consistent with the module (scaled-down channel counts).
    in_channels = [16, 32, 64]
    out_channels = [32, 32, 32]
    upsample_strides = [1, 2, 4]
    layer_strides = [2, 4, 8]          # backbone strides for each level
    N, H0, W0 = 2, 16, 16
    input_shape = (N, H0, W0, 1)       # (batch, x_size, y_size, _)

    key = jax.random.PRNGKey(0)
    keys = jax.random.split(key, 12)

    feats, params = [], []
    ki = 0
    for i in range(3):
        Hi, Wi = H0 // layer_strides[i], W0 // layer_strides[i]
        s = upsample_strides[i]
        x = jax.random.normal(keys[ki], (N, in_channels[i], Hi, Wi), jnp.float32); ki += 1
        w = 0.1 * jax.random.normal(keys[ki], (in_channels[i], out_channels[i], s, s),
                                    jnp.float32); ki += 1
        gamma = 1.0 + 0.1 * jax.random.normal(keys[ki], (out_channels[i],), jnp.float32); ki += 1
        beta = 0.1 * jax.random.normal(keys[ki], (out_channels[i],), jnp.float32); ki += 1
        mean = 0.05 * jnp.arange(out_channels[i], dtype=jnp.float32)
        var = 1.0 + 0.01 * jnp.arange(out_channels[i], dtype=jnp.float32)
        feats.append(x)
        params.append(dict(w=w, gamma=gamma, beta=beta, mean=mean, var=var, stride=s))

    out = sparse_second_fpn_forward(input_shape, layer_strides, feats, params,
                                    upsample_strides, out_channels)
    out = jax.block_until_ready(out)

    expected_shape = (N, sum(out_channels),
                      H0 // layer_strides[0], W0 // layer_strides[0])
    assert out.shape == expected_shape, (out.shape, expected_shape)

    ref = jax.block_until_ready(reference_forward(feats, params))
    # bf16 GEMM operands and bf16 kernel output -> loosened tolerance vs f32 ref.
    np.testing.assert_allclose(np.asarray(out), np.asarray(ref),
                               rtol=4e-2, atol=4e-2)
    print("KERNEL_OK")
</pallas_src>

<mosaic_0001>
module attributes {stable_mosaic.version = 11 : i64} {
  func.func @_deblock_kernel(%arg0: i32, %arg1: memref<128x16xbf16, #tpu.memory_space<vmem>>, %arg2: memref<16x32xbf16, #tpu.memory_space<vmem>>, %arg3: memref<1x32xf32, #tpu.memory_space<vmem>>, %arg4: memref<128x32xbf16, #tpu.memory_space<vmem>>) attributes {dimension_semantics = [#tpu.dimension_semantics<parallel>], iteration_bounds = array<i64: 1>, scalar_prefetch = 0 : i64, scratch_operands = 0 : i64, tpu.core_type = #tpu.core_type<tc>, window_params = [{transform_indices = @transform_0, window_bounds = array<i64: 128, 16>}, {pipeline_mode = #tpu.pipeline_mode<synchronous>, transform_indices = @transform_1, window_bounds = array<i64: 16, 32>}, {pipeline_mode = #tpu.pipeline_mode<synchronous>, transform_indices = @transform_2, window_bounds = array<i64: 1, 32>}, {transform_indices = @transform_3, window_bounds = array<i64: 128, 32>}]} {
    %c0 = arith.constant 0 : index
    %c0_0 = arith.constant 0 : index
    %0 = vector.load %arg1[%c0, %c0_0] : memref<128x16xbf16, #tpu.memory_space<vmem>>, vector<128x16xbf16>
    %c0_1 = arith.constant 0 : index
    %c0_2 = arith.constant 0 : index
    %1 = vector.load %arg2[%c0_1, %c0_2] : memref<16x32xbf16, #tpu.memory_space<vmem>>, vector<16x32xbf16>
    %cst = arith.constant dense<0.000000e+00> : vector<128x32xf32>
    %2 = tpu.matmul %0, %1, %cst {dimension_numbers = #tpu.dot_dimension_numbers<[1], [0], [0], [1], [0, 0, 1, 1], [], []>} : vector<128x16xbf16>, vector<16x32xbf16>, vector<128x32xf32> -> vector<128x32xf32>
    %c0_3 = arith.constant 0 : index
    %c0_4 = arith.constant 0 : index
    %3 = vector.load %arg3[%c0_3, %c0_4] : memref<1x32xf32, #tpu.memory_space<vmem>>, vector<1x32xf32>
    %4 = vector.broadcast %3 : vector<1x32xf32> to vector<128x32xf32>
    %5 = arith.addf %2, %4 : vector<128x32xf32>
    %cst_5 = arith.constant 0.000000e+00 : f32
    %6 = vector.broadcast %cst_5 : f32 to vector<128x32xf32>
    %7 = arith.maximumf %5, %6 : vector<128x32xf32>
    %8 = arith.truncf %7 : vector<128x32xf32> to vector<128x32xbf16>
    %c0_6 = arith.constant 0 : index
    %c0_7 = arith.constant 0 : index
    %9 = vector.load %arg4[%c0_6, %c0_7] : memref<128x32xbf16, #tpu.memory_space<vmem>>, vector<128x32xbf16>
    tpu.vector_store %arg4[%c0_6, %c0_7], %8 {strides = array<i32>} : memref<128x32xbf16, #tpu.memory_space<vmem>>, vector<128x32xbf16>,
    return
  }
  func.func @transform_0(%arg0: i32) -> (i32, i32) {
    %c0_i32 = arith.constant 0 : i32
    %c0_i32_0 = arith.constant 0 : i32
    return %arg0, %c0_i32 : i32, i32
  }
  func.func @transform_1(%arg0: i32) -> (i32, i32) {
    %c0_i32 = arith.constant 0 : i32
    %c0_i32_0 = arith.constant 0 : i32
    %c0_i32_1 = arith.constant 0 : i32
    return %c0_i32, %c0_i32_0 : i32, i32
  }
  func.func @transform_2(%arg0: i32) -> (i32, i32) {
    %c0_i32 = arith.constant 0 : i32
    %c0_i32_0 = arith.constant 0 : i32
    %c0_i32_1 = arith.constant 0 : i32
    return %c0_i32, %c0_i32_0 : i32, i32
  }
  func.func @transform_3(%arg0: i32) -> (i32, i32) {
    %c0_i32 = arith.constant 0 : i32
    %c0_i32_0 = arith.constant 0 : i32
    return %arg0, %c0_i32 : i32, i32
  }
}

</mosaic_0001>

<llo_original>
// kernel: tpu_custom_call.1
$region0: #{tpu_custom_call.1}
  #allocation0 [shape = 'u32[]', space=smem, size = 0x4, offset = 0x4, fixed_abs, tag = 'smem constant byte address 0x4 - core index']
  #allocation1 [shape = 'u32[144,128]{1,0:T(1,128)}', space=vmem, size = 0x12000, scoped, tag = 'internal scratch']
  %s0 = inlined_call_operand.vmem [shape: bf16[128,16], index: 0, kind: input, shape index: {}]
  %s1 = inlined_call_operand.vmem [shape: bf16[16,32], index: 1, kind: input, shape index: {}]
  %s2 = inlined_call_operand.vmem [shape: f32[1,32], index: 2, kind: input, shape index: {}]
  %s3 = inlined_call_operand.vmem [shape: bf16[128,32], index: 3, kind: output, shape index: {}]
  %s4 = sld [smem:[#allocation0]]
  $region22: #{tpu_custom_call.1} parent=0
    _
  %s6 = ssub.s32 1, %s4
  %s7 = scalar_select 0, %s6, %s4
  // Predicated region
  $region2: #{tpu_custom_call.1} parent=0 // pred_check
    _
  $region3: #{tpu_custom_call.1} parent=0 // pred_check_branch
    %9 = sbr.rel (0) target = $region5
  $region4: #{tpu_custom_call.1} parent=0 // pred_region
    _
  $region5: #{tpu_custom_call.1} parent=0 // pred_fallthru
    _
  // Predicated region
  $region6: #{tpu_custom_call.1} parent=0 // pred_check
    _
  $region7: #{tpu_custom_call.1} parent=0 // pred_check_branch
    %11 = sbr.rel (0) target = $region9
  $region8: #{tpu_custom_call.1} parent=0 // pred_region
    _
  $region9: #{tpu_custom_call.1} parent=0 // pred_fallthru
    _
  // Predicated region
  $region10: #{tpu_custom_call.1} parent=0 // pred_check
    _
  $region11: #{tpu_custom_call.1} parent=0 // pred_check_branch
    %13 = sbr.rel (0) target = $region13
  $region12: #{tpu_custom_call.1} parent=0 // pred_region
    _
  $region13: #{tpu_custom_call.1} parent=0 // pred_fallthru
    _
  %v15 = vld [vmem:[%s0] sm:$0xf]
  %v16 = vld [vmem:[%s0 + $0x4] sm:$0xf]
  %v17 = vld [vmem:[%s0 + $0x8] sm:$0xf]
  %v18 = vld [vmem:[%s0 + $0xc] sm:$0xf]
  %v19 = vld [vmem:[%s0 + $0x10] sm:$0xf]
  %v20 = vld [vmem:[%s0 + $0x14] sm:$0xf]
  %v21 = vld [vmem:[%s0 + $0x18] sm:$0xf]
  %v22 = vld [vmem:[%s0 + $0x1c] sm:$0xf]
  %v23 = vld [vmem:[%s0 + $0x20] sm:$0xf]
  %v24 = vld [vmem:[%s0 + $0x24] sm:$0xf]
  %v25 = vld [vmem:[%s0 + $0x28] sm:$0xf]
  %v26 = vld [vmem:[%s0 + $0x2c] sm:$0xf]
  %v27 = vld [vmem:[%s0 + $0x30] sm:$0xf]
  %v28 = vld [vmem:[%s0 + $0x34] sm:$0xf]
  %v29 = vld [vmem:[%s0 + $0x38] sm:$0xf]
  %v30 = vld [vmem:[%s0 + $0x3c] sm:$0xf]
  %v31 = vld [vmem:[%s1] sm:$0xf]
  %v32 = vld [vmem:[%s1 + $0x4] sm:$0xf]
  %v33 = vld [vmem:[%s2] sm:$0x1]
  %v35 = vlaneseq
  %v36 = vshrl.u32 %v35, 7
  %v37 = vsub.s32 0, %v36
  %v38 = vrot.slane %v33, %v37
  %v56 = vunpack.c.l.b16 %v15
  %v57 = vunpack.c.l.b16 %v16
  %v58 = vunpack.c.l.b16 %v17
  %v59 = vunpack.c.l.b16 %v18
  %v60 = vunpack.c.l.b16 %v19
  %v61 = vunpack.c.l.b16 %v20
  %v62 = vunpack.c.l.b16 %v21
  %v63 = vunpack.c.l.b16 %v22
  %v64 = vunpack.c.l.b16 %v23
  %v65 = vunpack.c.l.b16 %v24
  %v66 = vunpack.c.l.b16 %v25
  %v67 = vunpack.c.l.b16 %v26
  %v68 = vunpack.c.l.b16 %v27
  %v69 = vunpack.c.l.b16 %v28
  %v70 = vunpack.c.l.b16 %v29
  %v71 = vunpack.c.l.b16 %v30
  %v72 = vpack.c.b16 %v57, %v56
  %v73 = vpack.c.b16 %v59, %v58
  %v74 = vpack.c.b16 %v61, %v60
  %v75 = vpack.c.b16 %v63, %v62
  %v76 = vpack.c.b16 %v65, %v64
  %v77 = vpack.c.b16 %v67, %v66
  %v78 = vpack.c.b16 %v69, %v68
  %v79 = vpack.c.b16 %v71, %v70
  %v82 = vunpack.c.l.b16 %v31
  %v83 = vunpack.c.l.b16 %v32
  %v84 = vpack.c.b16 %v83, %v82
  %vm86 = vcmask 130048
  %v88 = vsel %vm86, %v72, 0
  %v91 = vsel %vm86, %v73, 0
  %v94 = vsel %vm86, %v74, 0
  %v97 = vsel %vm86, %v75, 0
  %v100 = vsel %vm86, %v76, 0
  %v103 = vsel %vm86, %v77, 0
  %v106 = vsel %vm86, %v78, 0
  %v109 = vsel %vm86, %v79, 0
  %111 = vmatprep.subr.bf16.mxu0 0
  %112 = vmatpush1.bf16.msra.mxu0 %v84
  %113 = vmatprep.subr.bf16.mxu0 0
  %114 = vmatpush1.bf16.msra.mxu0 0
  %115 = vmatprep.subr.bf16.mxu0 0
  %116 = vmatpush1.bf16.msra.mxu0 0
  %117 = vmatprep.subr.bf16.mxu0 0
  %118 = vmatpush1.bf16.msra.mxu0 0
  %119 = vmatprep.subr.bf16.mxu0 0
  %120 = vmatpush1.bf16.msra.mxu0 0
  %121 = vmatprep.subr.bf16.mxu0 0
  %122 = vmatpush1.bf16.msra.mxu0 0
  %123 = vmatprep.subr.bf16.mxu0 0
  %124 = vmatpush1.bf16.msra.mxu0 0
  %125 = vmatprep.subr.bf16.mxu0 0
  %126 = vmatpush1.bf16.msra.mxu0 0
  %127 = vmatprep.subr.bf16.mxu0 0
  %128 = vmatpush1.bf16.msra.mxu0 0
  %129 = vmatprep.subr.bf16.mxu0 0
  %130 = vmatpush1.bf16.msra.mxu0 0
  %131 = vmatprep.subr.bf16.mxu0 0
  %132 = vmatpush1.bf16.msra.mxu0 0
  %133 = vmatprep.subr.bf16.mxu0 0
  %134 = vmatpush1.bf16.msra.mxu0 0
  %135 = vmatprep.subr.bf16.mxu0 0
  %136 = vmatpush1.bf16.msra.mxu0 0
  %137 = vmatprep.subr.bf16.mxu0 0
  %138 = vmatpush1.bf16.msra.mxu0 0
  %139 = vmatprep.subr.bf16.mxu0 0
  %140 = vmatpush1.bf16.msra.mxu0 0
  %141 = vmatprep.subr.bf16.mxu0 0
  %142 = vmatpush1.bf16.msra.mxu0 0
  %143 = vmatprep.mubr.bf16.mxu0 0
  %144 = vmatmul.mubr.bf16.gmra.mrb[0].mxu0 %v88
  %v145 = vpop.f32.mrb[0].mxu0
  %v146 = vadd.f32 %v38, %v145
  %v147 = vpop.f32.mrb[0].mxu0
  %v148 = vpop.f32.mrb[0].mxu0
  %v149 = vadd.f32 %v38, %v148
  %v150 = vpop.f32.mrb[0].mxu0
  %151 = vmatprep.mubr.bf16.mxu0 0
  %152 = vmatmul.mubr.bf16.gmra.mrb[0].mxu0 %v91
  %v153 = vpop.f32.mrb[0].mxu0
  %v154 = vadd.f32 %v38, %v153
  %v155 = vpop.f32.mrb[0].mxu0
  %v156 = vpop.f32.mrb[0].mxu0
  %v157 = vadd.f32 %v38, %v156
  %v158 = vpop.f32.mrb[0].mxu0
  %159 = vmatprep.mubr.bf16.mxu0 0
  %160 = vmatmul.mubr.bf16.gmra.mrb[0].mxu0 %v94
  %v161 = vpop.f32.mrb[0].mxu0
  %v162 = vadd.f32 %v38, %v161
  %v163 = vpop.f32.mrb[0].mxu0
  %v164 = vpop.f32.mrb[0].mxu0
  %v165 = vadd.f32 %v38, %v164
  %v166 = vpop.f32.mrb[0].mxu0
  %167 = vmatprep.mubr.bf16.mxu0 0
  %168 = vmatmul.mubr.bf16.gmra.mrb[0].mxu0 %v97
  %v169 = vpop.f32.mrb[0].mxu0
  %v170 = vadd.f32 %v38, %v169
  %v171 = vpop.f32.mrb[0].mxu0
  %v172 = vpop.f32.mrb[0].mxu0
  %v173 = vadd.f32 %v38, %v172
  %v174 = vpop.f32.mrb[0].mxu0
  %175 = vmatprep.mubr.bf16.mxu0 0
  %176 = vmatmul.mubr.bf16.gmra.mrb[0].mxu0 %v100
  %v177 = vpop.f32.mrb[0].mxu0
  %v178 = vadd.f32 %v38, %v177
  %v179 = vpop.f32.mrb[0].mxu0
  %v180 = vpop.f32.mrb[0].mxu0
  %v181 = vadd.f32 %v38, %v180
  %v182 = vpop.f32.mrb[0].mxu0
  %183 = vmatprep.mubr.bf16.mxu0 0
  %184 = vmatmul.mubr.bf16.gmra.mrb[0].mxu0 %v103
  %v185 = vpop.f32.mrb[0].mxu0
  %v186 = vadd.f32 %v38, %v185
  %v187 = vpop.f32.mrb[0].mxu0
  %v188 = vpop.f32.mrb[0].mxu0
  %v189 = vadd.f32 %v38, %v188
  %v190 = vpop.f32.mrb[0].mxu0
  %191 = vmatprep.mubr.bf16.mxu0 0
  %192 = vmatmul.mubr.bf16.gmra.mrb[0].mxu0 %v106
  %v193 = vpop.f32.mrb[0].mxu0
  %v194 = vadd.f32 %v38, %v193
  %v195 = vpop.f32.mrb[0].mxu0
  %v196 = vpop.f32.mrb[0].mxu0
  %v197 = vadd.f32 %v38, %v196
  %v198 = vpop.f32.mrb[0].mxu0
  %199 = vmatprep.mubr.bf16.mxu0 0
  %200 = vmatmul.mubr.bf16.gmra.mrb[0].mxu0 %v109
  %v201 = vpop.f32.mrb[0].mxu0
  %v202 = vadd.f32 %v38, %v201
  %v203 = vpop.f32.mrb[0].mxu0
  %v204 = vpop.f32.mrb[0].mxu0
  %v205 = vadd.f32 %v38, %v204
  %v206 = vpop.f32.mrb[0].mxu0
  %207 = vdwg.mxu0
  %v208 = vmax.f32 %v146, 0.0
  %v209 = vmax.f32 %v149, 0.0
  %v210 = vmax.f32 %v154, 0.0
  %v211 = vmax.f32 %v157, 0.0
  %v212 = vmax.f32 %v162, 0.0
  %v213 = vmax.f32 %v165, 0.0
  %v214 = vmax.f32 %v170, 0.0
  %v215 = vmax.f32 %v173, 0.0
  %v216 = vmax.f32 %v178, 0.0
  %v217 = vmax.f32 %v181, 0.0
  %v218 = vmax.f32 %v186, 0.0
  %v219 = vmax.f32 %v189, 0.0
  %v220 = vmax.f32 %v194, 0.0
  %v221 = vmax.f32 %v197, 0.0
  %v222 = vmax.f32 %v202, 0.0
  %v223 = vmax.f32 %v205, 0.0
  %v224 = vpack.c.bf16 %v209, %v208
  %v225 = vpack.c.bf16 %v211, %v210
  %v226 = vpack.c.bf16 %v213, %v212
  %v227 = vpack.c.bf16 %v215, %v214
  %v228 = vpack.c.bf16 %v217, %v216
  %v229 = vpack.c.bf16 %v219, %v218
  %v230 = vpack.c.bf16 %v221, %v220
  %v231 = vpack.c.bf16 %v223, %v222
  %v240 = vunpack.c.l.b16 %v224
  %v241 = vunpack.c.h.b16 %v224
  %v242 = vunpack.c.l.b16 %v225
  %v243 = vunpack.c.h.b16 %v225
  %v244 = vunpack.c.l.b16 %v226
  %v245 = vunpack.c.h.b16 %v226
  %v246 = vunpack.c.l.b16 %v227
  %v247 = vunpack.c.h.b16 %v227
  %v248 = vunpack.c.l.b16 %v228
  %v249 = vunpack.c.h.b16 %v228
  %v250 = vunpack.c.l.b16 %v229
  %v251 = vunpack.c.h.b16 %v229
  %v252 = vunpack.c.l.b16 %v230
  %v253 = vunpack.c.h.b16 %v230
  %v254 = vunpack.c.l.b16 %v231
  %v255 = vunpack.c.h.b16 %v231
  %v256 = vpack.c.b16 %v240, %v240
  %v257 = vpack.c.b16 %v241, %v241
  %v258 = vpack.c.b16 %v242, %v242
  %v259 = vpack.c.b16 %v243, %v243
  %v260 = vpack.c.b16 %v244, %v244
  %v261 = vpack.c.b16 %v245, %v245
  %v262 = vpack.c.b16 %v246, %v246
  %v263 = vpack.c.b16 %v247, %v247
  %v264 = vpack.c.b16 %v248, %v248
  %v265 = vpack.c.b16 %v249, %v249
  %v266 = vpack.c.b16 %v250, %v250
  %v267 = vpack.c.b16 %v251, %v251
  %v268 = vpack.c.b16 %v252, %v252
  %v269 = vpack.c.b16 %v253, %v253
  %v270 = vpack.c.b16 %v254, %v254
  %v271 = vpack.c.b16 %v255, %v255
  %vm288 = vcmask 257024
  %289 = vst.msk [vmem:[%s3] sm:$0xf] %vm288, %v256
  %290 = vst.msk [vmem:[%s3 + $0x4] sm:$0xf] %vm288, %v257
  %291 = vst.msk [vmem:[%s3 + $0x8] sm:$0xf] %vm288, %v258
  %292 = vst.msk [vmem:[%s3 + $0xc] sm:$0xf] %vm288, %v259
  %293 = vst.msk [vmem:[%s3 + $0x10] sm:$0xf] %vm288, %v260
  %294 = vst.msk [vmem:[%s3 + $0x14] sm:$0xf] %vm288, %v261
  %295 = vst.msk [vmem:[%s3 + $0x18] sm:$0xf] %vm288, %v262
  %296 = vst.msk [vmem:[%s3 + $0x1c] sm:$0xf] %vm288, %v263
  %297 = vst.msk [vmem:[%s3 + $0x20] sm:$0xf] %vm288, %v264
  %298 = vst.msk [vmem:[%s3 + $0x24] sm:$0xf] %vm288, %v265
  %299 = vst.msk [vmem:[%s3 + $0x28] sm:$0xf] %vm288, %v266
  %300 = vst.msk [vmem:[%s3 + $0x2c] sm:$0xf] %vm288, %v267
  %301 = vst.msk [vmem:[%s3 + $0x30] sm:$0xf] %vm288, %v268
  %302 = vst.msk [vmem:[%s3 + $0x34] sm:$0xf] %vm288, %v269
  %303 = vst.msk [vmem:[%s3 + $0x38] sm:$0xf] %vm288, %v270
  %304 = vst.msk [vmem:[%s3 + $0x3c] sm:$0xf] %vm288, %v271
  // Predicated region
  $region14: #{tpu_custom_call.1} parent=0 // pred_check
    _
  $region15: #{tpu_custom_call.1} parent=0 // pred_check_branch
    %306 = sbr.rel (0) target = $region17
  $region16: #{tpu_custom_call.1} parent=0 // pred_region
    _
  $region17: #{tpu_custom_call.1} parent=0 // pred_fallthru
    _
  // Predicated region
  $region18: #{tpu_custom_call.1} parent=0 // pred_check
    _
  $region19: #{tpu_custom_call.1} parent=0 // pred_check_branch
    %308 = sbr.rel (0) target = $region21
  $region20: #{tpu_custom_call.1} parent=0 // pred_region
    _
  $region21: #{tpu_custom_call.1} parent=0 // pred_fallthru
    _

</llo_original>
